<compile_context>
chip_gen: v7x
topology: tpu7x:2x2x1
jax: 0.10.0
libtpu: 0.0.40
codegen_flags: <defaults>
</compile_context>

<pallas_src>
import functools
import math

import jax
import jax.numpy as jnp
from jax.experimental import pallas as pl
from jax.experimental.pallas import tpu as pltpu


def _round_up(x, m):
    return ((x + m - 1) // m) * m


def _attn_kernel(q_ref, k_ref, v_ref, o_ref, *, heads, head_dim):
    """One (TB, H*D) lane-dense tile of flattened (B*S) rows.

    Causal attention is over the H axis (matching SDPA applied directly to
    (B, S, H, D) inputs).  The math runs in a transposed (H*D, TB) layout so
    every VPU/XLU op is 128-lane dense, with exactly one batched exp and one
    batched approximate reciprocal per tile.
    """
    H, D = heads, head_dim
    scale = 1.0 / math.sqrt(D)

    # Fold the softmax scale into q with ONE dense full-width multiply.
    q = q_ref[...].astype(jnp.float32) * scale          # (TB, H*D)
    k = k_ref[...].astype(jnp.float32)
    v = v_ref[...].astype(jnp.float32)

    # Lane-dense math layout: rows -> lanes, head*dim -> sublanes.  One XLU
    # transpose per array per tile, hidden under the tile's HBM DMA.
    qT = q.T                                            # (H*D, TB)
    kT = k.T
    vT = v.T

    # Per-head sublane slices (aligned D-row blocks -> essentially free).
    q_h = [qT[h * D:(h + 1) * D, :] for h in range(H)]
    k_h = [kT[h * D:(h + 1) * D, :] for h in range(H)]
    v_h = [vT[h * D:(h + 1) * D, :] for h in range(H)]

    # Causal scores: query-head hq attends to key-heads t <= hq.  Each score
    # is a (D, TB) VPU multiply + sublane reduce -> lane-dense (1, TB) row.
    # TODO(synk): for large H (>~32) switch to an MXU / flash-style score path
    # instead of this unrolled small-H VPU/XLU loop.
    pairs = [(hq, t) for hq in range(H) for t in range(hq + 1)]
    s = {}
    m = []                                              # per-query running max
    for hq in range(H):
        row_max = None
        for t in range(hq + 1):
            st = jnp.sum(q_h[hq] * k_h[t], axis=0, keepdims=True)   # (1, TB)
            s[(hq, t)] = st
            row_max = st if row_max is None else jnp.maximum(row_max, st)
        m.append(row_max)

    # Pack ALL centered score rows so the tile issues a SINGLE batched exp
    # (one dense EUP stream instead of H*(H+1)/2 lane-sparse ones).
    packed = jnp.concatenate([s[(hq, t)] - m[hq] for (hq, t) in pairs], axis=0)
    p_all = jnp.exp(packed)                              # (n_pairs, TB)

    p = {}
    for i, (hq, t) in enumerate(pairs):
        p[(hq, t)] = p_all[i:i + 1, :]                   # (1, TB)

    # Batched softmax denominators: ONE approximate reciprocal on (H, TB).
    l = [p[(hq, 0)] for hq in range(H)]
    for hq in range(H):
        for t in range(1, hq + 1):
            l[hq] = l[hq] + p[(hq, t)]
    inv_l = pl.reciprocal(jnp.concatenate(l, axis=0), approx=True)   # (H, TB)

    # Weighted sums of V, normalized, assembled head-by-head on sublanes.
    outs = []
    for hq in range(H):
        acc = p[(hq, 0)] * v_h[0]
        for t in range(1, hq + 1):
            acc = acc + p[(hq, t)] * v_h[t]
        outs.append(acc * inv_l[hq:hq + 1, :])           # (D, TB)

    # Transpose back once and do a single full-width lane-dense store.
    o_ref[...] = jnp.concatenate(outs, axis=0).T.astype(o_ref.dtype)


def self_attention(q, k, v, *, block_rows=4096):
    """Causal SDPA with the exact axis convention of the PyTorch module.

    q, k, v: (B, S, H, D).  Attention (and the causal mask) is over axis 2
    (H), batched over (B, S), i.e. F.scaled_dot_product_attention applied to
    the (B, S, H, D) tensors directly, dropout_p = 0.
    """
    B, S, H, D = q.shape
    BS = B * S
    HD = H * D

    # Lane-dense I/O layout: fold (H, D) into one trailing axis.
    qf = q.reshape(BS, HD)
    kf = k.reshape(BS, HD)
    vf = v.reshape(BS, HD)

    # Row-tile size (multiple of 8).  No wrapper-side jnp.pad (that would add
    # a full extra HBM read+write of q/k/v): the grid uses cdiv and Pallas
    # pads the ragged last block; rows are independent, and out-of-bounds
    # output rows are dropped automatically.
    tb = min(block_rows, _round_up(BS, 8))
    # v7x has 2 TensorCores: keep >= 2 grid steps when there is enough work
    # so dimension_semantics=("parallel",) can actually shard across them.
    if BS >= 2048 and tb >= BS:
        tb = _round_up((BS + 1) // 2, 8)
    if tb >= BS:
        tb = BS  # single full-extent block: exempt from the (8,128) rule
    grid = (BS + tb - 1) // tb

    # Raise the scoped-VMEM limit to match the tile: (3 in + 1 out) arrays,
    # double-buffered, plus headroom for the in-kernel f32 transposed
    # intermediates.  Capped below v7x's 64 MiB physical VMEM per core.
    itemsize = jnp.dtype(q.dtype).itemsize
    vmem_limit = int(min(56 * 2 ** 20,
                         max(32 * 2 ** 20,
                             2 * 4 * tb * HD * itemsize + 16 * tb * HD * 4)))

    spec = pl.BlockSpec((tb, HD), lambda i: (i, 0))
    kernel = functools.partial(_attn_kernel, heads=H, head_dim=D)

    out = pl.pallas_call(
        kernel,
        out_shape=jax.ShapeDtypeStruct((BS, HD), q.dtype),
        grid_spec=pltpu.PrefetchScalarGridSpec(
            num_scalar_prefetch=0,
            grid=(grid,),
            in_specs=[spec, spec, spec],
            out_specs=spec,
        ),
        compiler_params=pltpu.CompilerParams(
            dimension_semantics=("parallel",),   # megacore sharding on v7x
            vmem_limit_bytes=vmem_limit,
        ),
    )(qf, kf, vf)

    return out.reshape(B, S, H, D)


def _reference(q, k, v):
    """Plain-JAX reference mirroring F.scaled_dot_product_attention(is_causal=True)
    applied to (B, S, H, D) inputs (attention over axis 2)."""
    q32, k32, v32 = (t.astype(jnp.float32) for t in (q, k, v))
    D = q.shape[-1]
    H = q.shape[2]
    s = jnp.einsum("bshd,bstd->bsht", q32, k32) / math.sqrt(D)
    causal = jnp.tril(jnp.ones((H, H), dtype=bool))
    s = jnp.where(causal[None, None], s, -jnp.inf)
    p = jax.nn.softmax(s, axis=-1)
    o = jnp.einsum("bsht,bstd->bshd", p, v32)
    return o.astype(q.dtype)


if __name__ == "__main__":
    key = jax.random.PRNGKey(0)
    kq, kk, kv = jax.random.split(key, 3)

    B, S, H, D = 2, 8, 4, 32
    q = jax.random.normal(kq, (B, S, H, D), dtype=jnp.float32)
    k = jax.random.normal(kk, (B, S, H, D), dtype=jnp.float32)
    v = jax.random.normal(kv, (B, S, H, D), dtype=jnp.float32)

    out = self_attention(q, k, v)
    out = jax.block_until_ready(out)

    ref = _reference(q, k, v)
    assert out.shape == (B, S, H, D)
    # Tolerance accounts for the EUP approximate reciprocal in the softmax.
    assert jnp.allclose(out, ref, atol=1e-2, rtol=1e-2), "mismatch vs reference"

    print("KERNEL_OK")
</pallas_src>

<mosaic_0001>
module attributes {stable_mosaic.version = 11 : i64} {
  func.func @_attn_kernel(%arg0: i32, %arg1: memref<16x128xf32, #tpu.memory_space<vmem>>, %arg2: memref<16x128xf32, #tpu.memory_space<vmem>>, %arg3: memref<16x128xf32, #tpu.memory_space<vmem>>, %arg4: memref<16x128xf32, #tpu.memory_space<vmem>>) attributes {dimension_semantics = [#tpu.dimension_semantics<parallel>], iteration_bounds = array<i64: 1>, scalar_prefetch = 0 : i64, scratch_operands = 0 : i64, tpu.core_type = #tpu.core_type<tc>, window_params = [{transform_indices = @transform_0, window_bounds = array<i64: 16, 128>}, {transform_indices = @transform_1, window_bounds = array<i64: 16, 128>}, {transform_indices = @transform_2, window_bounds = array<i64: 16, 128>}, {transform_indices = @transform_3, window_bounds = array<i64: 16, 128>}]} {
    %c0 = arith.constant 0 : index
    %c0_0 = arith.constant 0 : index
    %0 = vector.load %arg1[%c0, %c0_0] : memref<16x128xf32, #tpu.memory_space<vmem>>, vector<16x128xf32>
    %cst = arith.constant 0.176776692 : f32
    %1 = vector.broadcast %cst : f32 to vector<16x128xf32>
    %2 = arith.mulf %0, %1 : vector<16x128xf32>
    %c0_1 = arith.constant 0 : index
    %c0_2 = arith.constant 0 : index
    %3 = vector.load %arg2[%c0_1, %c0_2] : memref<16x128xf32, #tpu.memory_space<vmem>>, vector<16x128xf32>
    %c0_3 = arith.constant 0 : index
    %c0_4 = arith.constant 0 : index
    %4 = vector.load %arg3[%c0_3, %c0_4] : memref<16x128xf32, #tpu.memory_space<vmem>>, vector<16x128xf32>
    %5 = tpu.transpose %2, [1, 0] : vector<16x128xf32> -> vector<128x16xf32>
    %6 = tpu.transpose %3, [1, 0] : vector<16x128xf32> -> vector<128x16xf32>
    %7 = tpu.transpose %4, [1, 0] : vector<16x128xf32> -> vector<128x16xf32>
    %8 = vector.extract_strided_slice %5 {offsets = [0, 0], sizes = [32, 16], strides = [1, 1]} : vector<128x16xf32> to vector<32x16xf32>
    %9 = vector.extract_strided_slice %5 {offsets = [32, 0], sizes = [32, 16], strides = [1, 1]} : vector<128x16xf32> to vector<32x16xf32>
    %10 = vector.extract_strided_slice %5 {offsets = [64, 0], sizes = [32, 16], strides = [1, 1]} : vector<128x16xf32> to vector<32x16xf32>
    %11 = vector.extract_strided_slice %5 {offsets = [96, 0], sizes = [32, 16], strides = [1, 1]} : vector<128x16xf32> to vector<32x16xf32>
    %12 = vector.extract_strided_slice %6 {offsets = [0, 0], sizes = [32, 16], strides = [1, 1]} : vector<128x16xf32> to vector<32x16xf32>
    %13 = vector.extract_strided_slice %6 {offsets = [32, 0], sizes = [32, 16], strides = [1, 1]} : vector<128x16xf32> to vector<32x16xf32>
    %14 = vector.extract_strided_slice %6 {offsets = [64, 0], sizes = [32, 16], strides = [1, 1]} : vector<128x16xf32> to vector<32x16xf32>
    %15 = vector.extract_strided_slice %6 {offsets = [96, 0], sizes = [32, 16], strides = [1, 1]} : vector<128x16xf32> to vector<32x16xf32>
    %16 = vector.extract_strided_slice %7 {offsets = [0, 0], sizes = [32, 16], strides = [1, 1]} : vector<128x16xf32> to vector<32x16xf32>
    %17 = vector.extract_strided_slice %7 {offsets = [32, 0], sizes = [32, 16], strides = [1, 1]} : vector<128x16xf32> to vector<32x16xf32>
    %18 = vector.extract_strided_slice %7 {offsets = [64, 0], sizes = [32, 16], strides = [1, 1]} : vector<128x16xf32> to vector<32x16xf32>
    %19 = vector.extract_strided_slice %7 {offsets = [96, 0], sizes = [32, 16], strides = [1, 1]} : vector<128x16xf32> to vector<32x16xf32>
    %20 = arith.mulf %8, %12 : vector<32x16xf32>
    %cst_5 = arith.constant dense<0.000000e+00> : vector<16xf32>
    %21 = vector.multi_reduction <add>, %20, %cst_5 [0] : vector<32x16xf32> to vector<16xf32>
    %22 = vector.shape_cast %21 : vector<16xf32> to vector<1x16xf32>
    %23 = arith.mulf %9, %12 : vector<32x16xf32>
    %cst_6 = arith.constant dense<0.000000e+00> : vector<16xf32>
    %24 = vector.multi_reduction <add>, %23, %cst_6 [0] : vector<32x16xf32> to vector<16xf32>
    %25 = vector.shape_cast %24 : vector<16xf32> to vector<1x16xf32>
    %26 = arith.mulf %9, %13 : vector<32x16xf32>
    %cst_7 = arith.constant dense<0.000000e+00> : vector<16xf32>
    %27 = vector.multi_reduction <add>, %26, %cst_7 [0] : vector<32x16xf32> to vector<16xf32>
    %28 = vector.shape_cast %27 : vector<16xf32> to vector<1x16xf32>
    %29 = arith.maximumf %25, %28 : vector<1x16xf32>
    %30 = arith.mulf %10, %12 : vector<32x16xf32>
    %cst_8 = arith.constant dense<0.000000e+00> : vector<16xf32>
    %31 = vector.multi_reduction <add>, %30, %cst_8 [0] : vector<32x16xf32> to vector<16xf32>
    %32 = vector.shape_cast %31 : vector<16xf32> to vector<1x16xf32>
    %33 = arith.mulf %10, %13 : vector<32x16xf32>
    %cst_9 = arith.constant dense<0.000000e+00> : vector<16xf32>
    %34 = vector.multi_reduction <add>, %33, %cst_9 [0] : vector<32x16xf32> to vector<16xf32>
    %35 = vector.shape_cast %34 : vector<16xf32> to vector<1x16xf32>
    %36 = arith.maximumf %32, %35 : vector<1x16xf32>
    %37 = arith.mulf %10, %14 : vector<32x16xf32>
    %cst_10 = arith.constant dense<0.000000e+00> : vector<16xf32>
    %38 = vector.multi_reduction <add>, %37, %cst_10 [0] : vector<32x16xf32> to vector<16xf32>
    %39 = vector.shape_cast %38 : vector<16xf32> to vector<1x16xf32>
    %40 = arith.maximumf %36, %39 : vector<1x16xf32>
    %41 = arith.mulf %11, %12 : vector<32x16xf32>
    %cst_11 = arith.constant dense<0.000000e+00> : vector<16xf32>
    %42 = vector.multi_reduction <add>, %41, %cst_11 [0] : vector<32x16xf32> to vector<16xf32>
    %43 = vector.shape_cast %42 : vector<16xf32> to vector<1x16xf32>
    %44 = arith.mulf %11, %13 : vector<32x16xf32>
    %cst_12 = arith.constant dense<0.000000e+00> : vector<16xf32>
    %45 = vector.multi_reduction <add>, %44, %cst_12 [0] : vector<32x16xf32> to vector<16xf32>
    %46 = vector.shape_cast %45 : vector<16xf32> to vector<1x16xf32>
    %47 = arith.maximumf %43, %46 : vector<1x16xf32>
    %48 = arith.mulf %11, %14 : vector<32x16xf32>
    %cst_13 = arith.constant dense<0.000000e+00> : vector<16xf32>
    %49 = vector.multi_reduction <add>, %48, %cst_13 [0] : vector<32x16xf32> to vector<16xf32>
    %50 = vector.shape_cast %49 : vector<16xf32> to vector<1x16xf32>
    %51 = arith.maximumf %47, %50 : vector<1x16xf32>
    %52 = arith.mulf %11, %15 : vector<32x16xf32>
    %cst_14 = arith.constant dense<0.000000e+00> : vector<16xf32>
    %53 = vector.multi_reduction <add>, %52, %cst_14 [0] : vector<32x16xf32> to vector<16xf32>
    %54 = vector.shape_cast %53 : vector<16xf32> to vector<1x16xf32>
    %55 = arith.maximumf %51, %54 : vector<1x16xf32>
    %56 = arith.subf %22, %22 : vector<1x16xf32>
    %57 = arith.subf %25, %29 : vector<1x16xf32>
    %58 = arith.subf %28, %29 : vector<1x16xf32>
    %59 = arith.subf %32, %40 : vector<1x16xf32>
    %60 = arith.subf %35, %40 : vector<1x16xf32>
    %61 = arith.subf %39, %40 : vector<1x16xf32>
    %62 = arith.subf %43, %55 : vector<1x16xf32>
    %63 = arith.subf %46, %55 : vector<1x16xf32>
    %64 = arith.subf %50, %55 : vector<1x16xf32>
    %65 = arith.subf %54, %55 : vector<1x16xf32>
    %66 = tpu.concatenate %56, %57, %58, %59, %60, %61, %62, %63, %64, %65 in 0 : vector<1x16xf32>, vector<1x16xf32>, vector<1x16xf32>, vector<1x16xf32>, vector<1x16xf32>, vector<1x16xf32>, vector<1x16xf32>, vector<1x16xf32>, vector<1x16xf32>, vector<1x16xf32> -> vector<10x16xf32>
    %67 = math.exp %66 : vector<10x16xf32>
    %68 = vector.extract_strided_slice %67 {offsets = [0, 0], sizes = [1, 16], strides = [1, 1]} : vector<10x16xf32> to vector<1x16xf32>
    %69 = vector.extract_strided_slice %67 {offsets = [1, 0], sizes = [1, 16], strides = [1, 1]} : vector<10x16xf32> to vector<1x16xf32>
    %70 = vector.extract_strided_slice %67 {offsets = [2, 0], sizes = [1, 16], strides = [1, 1]} : vector<10x16xf32> to vector<1x16xf32>
    %71 = vector.extract_strided_slice %67 {offsets = [3, 0], sizes = [1, 16], strides = [1, 1]} : vector<10x16xf32> to vector<1x16xf32>
    %72 = vector.extract_strided_slice %67 {offsets = [4, 0], sizes = [1, 16], strides = [1, 1]} : vector<10x16xf32> to vector<1x16xf32>
    %73 = vector.extract_strided_slice %67 {offsets = [5, 0], sizes = [1, 16], strides = [1, 1]} : vector<10x16xf32> to vector<1x16xf32>
    %74 = vector.extract_strided_slice %67 {offsets = [6, 0], sizes = [1, 16], strides = [1, 1]} : vector<10x16xf32> to vector<1x16xf32>
    %75 = vector.extract_strided_slice %67 {offsets = [7, 0], sizes = [1, 16], strides = [1, 1]} : vector<10x16xf32> to vector<1x16xf32>
    %76 = vector.extract_strided_slice %67 {offsets = [8, 0], sizes = [1, 16], strides = [1, 1]} : vector<10x16xf32> to vector<1x16xf32>
    %77 = vector.extract_strided_slice %67 {offsets = [9, 0], sizes = [1, 16], strides = [1, 1]} : vector<10x16xf32> to vector<1x16xf32>
    %78 = arith.addf %69, %70 : vector<1x16xf32>
    %79 = arith.addf %71, %72 : vector<1x16xf32>
    %80 = arith.addf %79, %73 : vector<1x16xf32>
    %81 = arith.addf %74, %75 : vector<1x16xf32>
    %82 = arith.addf %81, %76 : vector<1x16xf32>
    %83 = arith.addf %82, %77 : vector<1x16xf32>
    %84 = tpu.concatenate %68, %78, %80, %83 in 0 : vector<1x16xf32>, vector<1x16xf32>, vector<1x16xf32>, vector<1x16xf32> -> vector<4x16xf32>
    %85 = tpu.reciprocal %84 {approx = true} : vector<4x16xf32> -> vector<4x16xf32>
    %86 = vector.broadcast %68 : vector<1x16xf32> to vector<32x16xf32>
    %87 = arith.mulf %86, %16 : vector<32x16xf32>
    %88 = vector.extract_strided_slice %85 {offsets = [0, 0], sizes = [1, 16], strides = [1, 1]} : vector<4x16xf32> to vector<1x16xf32>
    %89 = vector.broadcast %88 : vector<1x16xf32> to vector<32x16xf32>
    %90 = arith.mulf %87, %89 : vector<32x16xf32>
    %91 = vector.broadcast %69 : vector<1x16xf32> to vector<32x16xf32>
    %92 = arith.mulf %91, %16 : vector<32x16xf32>
    %93 = vector.broadcast %70 : vector<1x16xf32> to vector<32x16xf32>
    %94 = arith.mulf %93, %17 : vector<32x16xf32>
    %95 = arith.addf %92, %94 : vector<32x16xf32>
    %96 = vector.extract_strided_slice %85 {offsets = [1, 0], sizes = [1, 16], strides = [1, 1]} : vector<4x16xf32> to vector<1x16xf32>
    %97 = vector.broadcast %96 : vector<1x16xf32> to vector<32x16xf32>
    %98 = arith.mulf %95, %97 : vector<32x16xf32>
    %99 = vector.broadcast %71 : vector<1x16xf32> to vector<32x16xf32>
    %100 = arith.mulf %99, %16 : vector<32x16xf32>
    %101 = vector.broadcast %72 : vector<1x16xf32> to vector<32x16xf32>
    %102 = arith.mulf %101, %17 : vector<32x16xf32>
    %103 = arith.addf %100, %102 : vector<32x16xf32>
    %104 = vector.broadcast %73 : vector<1x16xf32> to vector<32x16xf32>
    %105 = arith.mulf %104, %18 : vector<32x16xf32>
    %106 = arith.addf %103, %105 : vector<32x16xf32>
    %107 = vector.extract_strided_slice %85 {offsets = [2, 0], sizes = [1, 16], strides = [1, 1]} : vector<4x16xf32> to vector<1x16xf32>
    %108 = vector.broadcast %107 : vector<1x16xf32> to vector<32x16xf32>
    %109 = arith.mulf %106, %108 : vector<32x16xf32>
    %110 = vector.broadcast %74 : vector<1x16xf32> to vector<32x16xf32>
    %111 = arith.mulf %110, %16 : vector<32x16xf32>
    %112 = vector.broadcast %75 : vector<1x16xf32> to vector<32x16xf32>
    %113 = arith.mulf %112, %17 : vector<32x16xf32>
    %114 = arith.addf %111, %113 : vector<32x16xf32>
    %115 = vector.broadcast %76 : vector<1x16xf32> to vector<32x16xf32>
    %116 = arith.mulf %115, %18 : vector<32x16xf32>
    %117 = arith.addf %114, %116 : vector<32x16xf32>
    %118 = vector.broadcast %77 : vector<1x16xf32> to vector<32x16xf32>
    %119 = arith.mulf %118, %19 : vector<32x16xf32>
    %120 = arith.addf %117, %119 : vector<32x16xf32>
    %121 = vector.extract_strided_slice %85 {offsets = [3, 0], sizes = [1, 16], strides = [1, 1]} : vector<4x16xf32> to vector<1x16xf32>
    %122 = vector.broadcast %121 : vector<1x16xf32> to vector<32x16xf32>
    %123 = arith.mulf %120, %122 : vector<32x16xf32>
    %124 = tpu.concatenate %90, %98, %109, %123 in 0 : vector<32x16xf32>, vector<32x16xf32>, vector<32x16xf32>, vector<32x16xf32> -> vector<128x16xf32>
    %125 = tpu.transpose %124, [1, 0] : vector<128x16xf32> -> vector<16x128xf32>
    %c0_15 = arith.constant 0 : index
    %c0_16 = arith.constant 0 : index
    %126 = vector.load %arg4[%c0_15, %c0_16] : memref<16x128xf32, #tpu.memory_space<vmem>>, vector<16x128xf32>
    tpu.vector_store %arg4[%c0_15, %c0_16], %125 {strides = array<i32>} : memref<16x128xf32, #tpu.memory_space<vmem>>, vector<16x128xf32>,
    return
  }
  func.func @transform_0(%arg0: i32) -> (i32, i32) {
    %c0_i32 = arith.constant 0 : i32
    %c0_i32_0 = arith.constant 0 : i32
    return %arg0, %c0_i32 : i32, i32
  }
  func.func @transform_1(%arg0: i32) -> (i32, i32) {
    %c0_i32 = arith.constant 0 : i32
    %c0_i32_0 = arith.constant 0 : i32
    return %arg0, %c0_i32 : i32, i32
  }
  func.func @transform_2(%arg0: i32) -> (i32, i32) {
    %c0_i32 = arith.constant 0 : i32
    %c0_i32_0 = arith.constant 0 : i32
    return %arg0, %c0_i32 : i32, i32
  }
  func.func @transform_3(%arg0: i32) -> (i32, i32) {
    %c0_i32 = arith.constant 0 : i32
    %c0_i32_0 = arith.constant 0 : i32
    return %arg0, %c0_i32 : i32, i32
  }
}

</mosaic_0001>

<llo_original>
// kernel: tpu_custom_call.1
$region0: #{tpu_custom_call.1}
  #allocation0 [shape = 'u32[]', space=smem, size = 0x4, offset = 0x4, fixed_abs, tag = 'smem constant byte address 0x4 - core index']
  #allocation1 [shape = 'u32[144,128]{1,0:T(1,128)}', space=vmem, size = 0x12000, scoped, tag = 'internal scratch']
  %s0 = inlined_call_operand.hbm [shape: f32[16,128], index: 0, kind: input, shape index: {}]
  %s1 = inlined_call_operand.hbm [shape: f32[16,128], index: 1, kind: input, shape index: {}]
  %s2 = inlined_call_operand.hbm [shape: f32[16,128], index: 2, kind: input, shape index: {}]
  %s3 = inlined_call_operand.hbm [shape: f32[16,128], index: 3, kind: output, shape index: {}]
  %s4 = sld [smem:[#allocation0]]
  $region34: #{tpu_custom_call.1} parent=0
    _
  %s6 = ssub.s32 1, %s4
  %s7 = scalar_select 0, %s6, %s4
  $region1: #{tpu_custom_call.1} parent=0
    #allocation2 [shape = 'u8[8192]{0}', space=vmem, size = 0x2000, scoped, tag = 'input window, operand 0, single buffered']
    #allocation3 [shape = 's32[1]{0}', space=sflag, size = 0x4, scoped, tag = 'scoped memory for tpu_custom_call.1']
    #allocation4 [shape = 's32[1]{0}', space=sflag, size = 0x4, scoped, tag = 'scoped memory for tpu_custom_call.1']
    #allocation5 [shape = 'u8[8192]{0}', space=vmem, size = 0x2000, scoped, tag = 'input window, operand 1, single buffered']
    #allocation6 [shape = 's32[1]{0}', space=sflag, size = 0x4, scoped, tag = 'scoped memory for tpu_custom_call.1']
    #allocation7 [shape = 'u8[8192]{0}', space=vmem, size = 0x2000, scoped, tag = 'input window, operand 2, single buffered']
    #allocation8 [shape = 'u8[8192]{0}', space=vmem, size = 0x2000, scoped, tag = 'output window, operand 0, single buffered']
    %8 = vsyncpa [#allocation3], 0
    %9 = vsyncpa [#allocation6], 0
    %10 = vsyncpa [#allocation4], 0
    // Predicated region
    $region2: #{tpu_custom_call.1} parent=1 // pred_check
      _
    $region3: #{tpu_custom_call.1} parent=1 // pred_check_branch
      %12 = sbr.rel (0) target = $region5
    $region4: #{tpu_custom_call.1} parent=1 // pred_region
      %s14 = ssub.s32 256, 256
      %15 = vsyncadd [#allocation3], %s14
      %s16 = sshll.u32 [#allocation2], 4
      %s17 = int_to_ptr.vmem [resolvable:$true] %s16
      %22 = dma.hbm_to_vmem [thread:$0]  %s0, 256, %s17, [#allocation3], 128, 128, 8
    $region5: #{tpu_custom_call.1} parent=1 // pred_fallthru
      _
    // Predicated region
    $region6: #{tpu_custom_call.1} parent=1 // pred_check
      _
    $region7: #{tpu_custom_call.1} parent=1 // pred_check_branch
      %24 = sbr.rel (0) target = $region9
    $region8: #{tpu_custom_call.1} parent=1 // pred_region
      %s26 = ssub.s32 256, 256
      %27 = vsyncadd [#allocation6], %s26
      %s28 = sshll.u32 [#allocation5], 4
      %s29 = int_to_ptr.vmem [resolvable:$true] %s28
      %34 = dma.hbm_to_vmem [thread:$0]  %s1, 256, %s29, [#allocation6], 128, 128, 8
    $region9: #{tpu_custom_call.1} parent=1 // pred_fallthru
      _
    // Predicated region
    $region10: #{tpu_custom_call.1} parent=1 // pred_check
      _
    $region11: #{tpu_custom_call.1} parent=1 // pred_check_branch
      %36 = sbr.rel (0) target = $region13
    $region12: #{tpu_custom_call.1} parent=1 // pred_region
      %s38 = ssub.s32 256, 256
      %39 = vsyncadd [#allocation6], %s38
      %s40 = sshll.u32 [#allocation7], 4
      %s41 = int_to_ptr.vmem [resolvable:$true] %s40
      %46 = dma.hbm_to_vmem [thread:$0]  %s2, 256, %s41, [#allocation6], 128, 128, 8
    $region13: #{tpu_custom_call.1} parent=1 // pred_fallthru
      _
    // Predicated region
    $region14: #{tpu_custom_call.1} parent=1 // pred_check
      _
    $region15: #{tpu_custom_call.1} parent=1 // pred_check_branch
      %48 = sbr.rel (0) target = $region17
    $region16: #{tpu_custom_call.1} parent=1 // pred_region
      %49 = dma.done [#allocation3], 256
    $region17: #{tpu_custom_call.1} parent=1 // pred_fallthru
      _
    // Predicated region
    $region18: #{tpu_custom_call.1} parent=1 // pred_check
      _
    $region19: #{tpu_custom_call.1} parent=1 // pred_check_branch
      %51 = sbr.rel (0) target = $region21
    $region20: #{tpu_custom_call.1} parent=1 // pred_region
      %52 = dma.done [#allocation6], 256
    $region21: #{tpu_custom_call.1} parent=1 // pred_fallthru
      _
    // Predicated region
    $region22: #{tpu_custom_call.1} parent=1 // pred_check
      _
    $region23: #{tpu_custom_call.1} parent=1 // pred_check_branch
      %54 = sbr.rel (0) target = $region25
    $region24: #{tpu_custom_call.1} parent=1 // pred_region
      %55 = dma.done [#allocation6], 256
    $region25: #{tpu_custom_call.1} parent=1 // pred_fallthru
      _
    %v56 = vld [vmem:[#allocation2] sm:$0xff]
    %v57 = vld [vmem:[#allocation2 + $0x8] sm:$0xff]
    %v58 = vmul.f32 %v56, 0.17677669
    %v59 = vmul.f32 %v57, 0.17677669
    %v60 = vld [vmem:[#allocation5] sm:$0xff]
    %v61 = vld [vmem:[#allocation5 + $0x8] sm:$0xff]
    %v62 = vld [vmem:[#allocation7] sm:$0xff]
    %v63 = vld [vmem:[#allocation7 + $0x8] sm:$0xff]
    %64 = vxpose.xlu0.b32.start [1/16] %v58, 128
    %65 = vxpose.xlu0.b32.cont [2/16] %v59, 128
    %66 = vxpose.xlu0.b32.cont [3/16] 0.0, 128
    %67 = vxpose.xlu0.b32.cont [4/16] 0.0, 128
    %68 = vxpose.xlu0.b32.cont [5/16] 0.0, 128
    %69 = vxpose.xlu0.b32.cont [6/16] 0.0, 128
    %70 = vxpose.xlu0.b32.cont [7/16] 0.0, 128
    %71 = vxpose.xlu0.b32.cont [8/16] 0.0, 128
    %72 = vxpose.xlu0.b32.cont [9/16] 0.0, 128
    %73 = vxpose.xlu0.b32.cont [10/16] 0.0, 128
    %74 = vxpose.xlu0.b32.cont [11/16] 0.0, 128
    %75 = vxpose.xlu0.b32.cont [12/16] 0.0, 128
    %76 = vxpose.xlu0.b32.cont [13/16] 0.0, 128
    %77 = vxpose.xlu0.b32.cont [14/16] 0.0, 128
    %78 = vxpose.xlu0.b32.cont [15/16] 0.0, 128
    %79 = vxpose.xlu0.b32.end [16/16] 0.0, 128
    %v80 = vpop.trf.xlu0
    %v81 = vpop.trf.xlu0
    %v82 = vpop.trf.xlu0
    %v83 = vpop.trf.xlu0
    %v84 = vpop.trf.xlu0
    %v85 = vpop.trf.xlu0
    %v86 = vpop.trf.xlu0
    %v87 = vpop.trf.xlu0
    %v88 = vpop.trf.xlu0
    %v89 = vpop.trf.xlu0
    %v90 = vpop.trf.xlu0
    %v91 = vpop.trf.xlu0
    %v92 = vpop.trf.xlu0
    %v93 = vpop.trf.xlu0
    %v94 = vpop.trf.xlu0
    %v95 = vpop.trf.xlu0
    %96 = vxpose.xlu0.b32.start [1/16] %v60, 128
    %97 = vxpose.xlu0.b32.cont [2/16] %v61, 128
    %98 = vxpose.xlu0.b32.cont [3/16] 0.0, 128
    %99 = vxpose.xlu0.b32.cont [4/16] 0.0, 128
    %100 = vxpose.xlu0.b32.cont [5/16] 0.0, 128
    %101 = vxpose.xlu0.b32.cont [6/16] 0.0, 128
    %102 = vxpose.xlu0.b32.cont [7/16] 0.0, 128
    %103 = vxpose.xlu0.b32.cont [8/16] 0.0, 128
    %104 = vxpose.xlu0.b32.cont [9/16] 0.0, 128
    %105 = vxpose.xlu0.b32.cont [10/16] 0.0, 128
    %106 = vxpose.xlu0.b32.cont [11/16] 0.0, 128
    %107 = vxpose.xlu0.b32.cont [12/16] 0.0, 128
    %108 = vxpose.xlu0.b32.cont [13/16] 0.0, 128
    %109 = vxpose.xlu0.b32.cont [14/16] 0.0, 128
    %110 = vxpose.xlu0.b32.cont [15/16] 0.0, 128
    %111 = vxpose.xlu0.b32.end [16/16] 0.0, 128
    %v112 = vpop.trf.xlu0
    %v113 = vpop.trf.xlu0
    %v114 = vpop.trf.xlu0
    %v115 = vpop.trf.xlu0
    %v116 = vpop.trf.xlu0
    %v117 = vpop.trf.xlu0
    %v118 = vpop.trf.xlu0
    %v119 = vpop.trf.xlu0
    %v120 = vpop.trf.xlu0
    %v121 = vpop.trf.xlu0
    %v122 = vpop.trf.xlu0
    %v123 = vpop.trf.xlu0
    %v124 = vpop.trf.xlu0
    %v125 = vpop.trf.xlu0
    %v126 = vpop.trf.xlu0
    %v127 = vpop.trf.xlu0
    %128 = vxpose.xlu0.b32.start [1/16] %v62, 128
    %129 = vxpose.xlu0.b32.cont [2/16] %v63, 128
    %130 = vxpose.xlu0.b32.cont [3/16] 0.0, 128
    %131 = vxpose.xlu0.b32.cont [4/16] 0.0, 128
    %132 = vxpose.xlu0.b32.cont [5/16] 0.0, 128
    %133 = vxpose.xlu0.b32.cont [6/16] 0.0, 128
    %134 = vxpose.xlu0.b32.cont [7/16] 0.0, 128
    %135 = vxpose.xlu0.b32.cont [8/16] 0.0, 128
    %136 = vxpose.xlu0.b32.cont [9/16] 0.0, 128
    %137 = vxpose.xlu0.b32.cont [10/16] 0.0, 128
    %138 = vxpose.xlu0.b32.cont [11/16] 0.0, 128
    %139 = vxpose.xlu0.b32.cont [12/16] 0.0, 128
    %140 = vxpose.xlu0.b32.cont [13/16] 0.0, 128
    %141 = vxpose.xlu0.b32.cont [14/16] 0.0, 128
    %142 = vxpose.xlu0.b32.cont [15/16] 0.0, 128
    %143 = vxpose.xlu0.b32.end [16/16] 0.0, 128
    %v144 = vpop.trf.xlu0
    %v145 = vpop.trf.xlu0
    %v146 = vpop.trf.xlu0
    %v147 = vpop.trf.xlu0
    %v148 = vpop.trf.xlu0
    %v149 = vpop.trf.xlu0
    %v150 = vpop.trf.xlu0
    %v151 = vpop.trf.xlu0
    %v152 = vpop.trf.xlu0
    %v153 = vpop.trf.xlu0
    %v154 = vpop.trf.xlu0
    %v155 = vpop.trf.xlu0
    %v156 = vpop.trf.xlu0
    %v157 = vpop.trf.xlu0
    %v158 = vpop.trf.xlu0
    %v159 = vpop.trf.xlu0
    %v160 = vmul.f32 %v80, %v112
    %v161 = vmul.f32 %v81, %v113
    %v162 = vmul.f32 %v82, %v114
    %v163 = vmul.f32 %v83, %v115
    %vm164 = vcmask 130048
    %v165 = vsel %vm164, %v160, 0.0
    %v166 = vsel %vm164, %v161, 0.0
    %v167 = vadd.f32 %v165, %v166
    %v168 = vsel %vm164, %v162, 0.0
    %v169 = vadd.f32 %v167, %v168
    %v170 = vsel %vm164, %v163, 0.0
    %v171 = vadd.f32 %v169, %v170
    %v172 = vrot.slane %v171, 4
    %v173 = vadd.f32 %v171, %v172
    %v174 = vrot.slane %v173, 2
    %v175 = vadd.f32 %v173, %v174
    %v176 = vrot.slane %v175, 1
    %v177 = vadd.f32 %v175, %v176
    %v178 = vmul.f32 %v84, %v112
    %v179 = vmul.f32 %v85, %v113
    %v180 = vmul.f32 %v86, %v114
    %v181 = vmul.f32 %v87, %v115
    %v182 = vsel %vm164, %v178, 0.0
    %v183 = vsel %vm164, %v179, 0.0
    %v184 = vadd.f32 %v182, %v183
    %v185 = vsel %vm164, %v180, 0.0
    %v186 = vadd.f32 %v184, %v185
    %v187 = vsel %vm164, %v181, 0.0
    %v188 = vadd.f32 %v186, %v187
    %v189 = vrot.slane %v188, 4
    %v190 = vadd.f32 %v188, %v189
    %v191 = vrot.slane %v190, 2
    %v192 = vadd.f32 %v190, %v191
    %v193 = vrot.slane %v192, 1
    %v194 = vadd.f32 %v192, %v193
    %v195 = vmul.f32 %v84, %v116
    %v196 = vmul.f32 %v85, %v117
    %v197 = vmul.f32 %v86, %v118
    %v198 = vmul.f32 %v87, %v119
    %v199 = vsel %vm164, %v195, 0.0
    %v200 = vsel %vm164, %v196, 0.0
    %v201 = vadd.f32 %v199, %v200
    %v202 = vsel %vm164, %v197, 0.0
    %v203 = vadd.f32 %v201, %v202
    %v204 = vsel %vm164, %v198, 0.0
    %v205 = vadd.f32 %v203, %v204
    %v206 = vrot.slane %v205, 4
    %v207 = vadd.f32 %v205, %v206
    %v208 = vrot.slane %v207, 2
    %v209 = vadd.f32 %v207, %v208
    %v210 = vrot.slane %v209, 1
    %v211 = vadd.f32 %v209, %v210
    %v212 = vmax.f32 %v194, %v211
    %v213 = vmul.f32 %v88, %v112
    %v214 = vmul.f32 %v89, %v113
    %v215 = vmul.f32 %v90, %v114
    %v216 = vmul.f32 %v91, %v115
    %v217 = vsel %vm164, %v213, 0.0
    %v218 = vsel %vm164, %v214, 0.0
    %v219 = vadd.f32 %v217, %v218
    %v220 = vsel %vm164, %v215, 0.0
    %v221 = vadd.f32 %v219, %v220
    %v222 = vsel %vm164, %v216, 0.0
    %v223 = vadd.f32 %v221, %v222
    %v224 = vrot.slane %v223, 4
    %v225 = vadd.f32 %v223, %v224
    %v226 = vrot.slane %v225, 2
    %v227 = vadd.f32 %v225, %v226
    %v228 = vrot.slane %v227, 1
    %v229 = vadd.f32 %v227, %v228
    %v230 = vmul.f32 %v88, %v116
    %v231 = vmul.f32 %v89, %v117
    %v232 = vmul.f32 %v90, %v118
    %v233 = vmul.f32 %v91, %v119
    %v234 = vsel %vm164, %v230, 0.0
    %v235 = vsel %vm164, %v231, 0.0
    %v236 = vadd.f32 %v234, %v235
    %v237 = vsel %vm164, %v232, 0.0
    %v238 = vadd.f32 %v236, %v237
    %v239 = vsel %vm164, %v233, 0.0
    %v240 = vadd.f32 %v238, %v239
    %v241 = vrot.slane %v240, 4
    %v242 = vadd.f32 %v240, %v241
    %v243 = vrot.slane %v242, 2
    %v244 = vadd.f32 %v242, %v243
    %v245 = vrot.slane %v244, 1
    %v246 = vadd.f32 %v244, %v245
    %v247 = vmax.f32 %v229, %v246
    %v248 = vmul.f32 %v88, %v120
    %v249 = vmul.f32 %v89, %v121
    %v250 = vmul.f32 %v90, %v122
    %v251 = vmul.f32 %v91, %v123
    %v252 = vsel %vm164, %v248, 0.0
    %v253 = vsel %vm164, %v249, 0.0
    %v254 = vadd.f32 %v252, %v253
    %v255 = vsel %vm164, %v250, 0.0
    %v256 = vadd.f32 %v254, %v255
    %v257 = vsel %vm164, %v251, 0.0
    %v258 = vadd.f32 %v256, %v257
    %v259 = vrot.slane %v258, 4
    %v260 = vadd.f32 %v258, %v259
    %v261 = vrot.slane %v260, 2
    %v262 = vadd.f32 %v260, %v261
    %v263 = vrot.slane %v262, 1
    %v264 = vadd.f32 %v262, %v263
    %v265 = vmax.f32 %v247, %v264
    %v266 = vmul.f32 %v92, %v112
    %v267 = vmul.f32 %v93, %v113
    %v268 = vmul.f32 %v94, %v114
    %v269 = vmul.f32 %v95, %v115
    %v270 = vsel %vm164, %v266, 0.0
    %v271 = vsel %vm164, %v267, 0.0
    %v272 = vadd.f32 %v270, %v271
    %v273 = vsel %vm164, %v268, 0.0
    %v274 = vadd.f32 %v272, %v273
    %v275 = vsel %vm164, %v269, 0.0
    %v276 = vadd.f32 %v274, %v275
    %v277 = vrot.slane %v276, 4
    %v278 = vadd.f32 %v276, %v277
    %v279 = vrot.slane %v278, 2
    %v280 = vadd.f32 %v278, %v279
    %v281 = vrot.slane %v280, 1
    %v282 = vadd.f32 %v280, %v281
    %v283 = vmul.f32 %v92, %v116
    %v284 = vmul.f32 %v93, %v117
    %v285 = vmul.f32 %v94, %v118
    %v286 = vmul.f32 %v95, %v119
    %v287 = vsel %vm164, %v283, 0.0
    %v288 = vsel %vm164, %v284, 0.0
    %v289 = vadd.f32 %v287, %v288
    %v290 = vsel %vm164, %v285, 0.0
    %v291 = vadd.f32 %v289, %v290
    %v292 = vsel %vm164, %v286, 0.0
    %v293 = vadd.f32 %v291, %v292
    %v294 = vrot.slane %v293, 4
    %v295 = vadd.f32 %v293, %v294
    %v296 = vrot.slane %v295, 2
    %v297 = vadd.f32 %v295, %v296
    %v298 = vrot.slane %v297, 1
    %v299 = vadd.f32 %v297, %v298
    %v300 = vmax.f32 %v282, %v299
    %v301 = vmul.f32 %v92, %v120
    %v302 = vmul.f32 %v93, %v121
    %v303 = vmul.f32 %v94, %v122
    %v304 = vmul.f32 %v95, %v123
    %v305 = vsel %vm164, %v301, 0.0
    %v306 = vsel %vm164, %v302, 0.0
    %v307 = vadd.f32 %v305, %v306
    %v308 = vsel %vm164, %v303, 0.0
    %v309 = vadd.f32 %v307, %v308
    %v310 = vsel %vm164, %v304, 0.0
    %v311 = vadd.f32 %v309, %v310
    %v312 = vrot.slane %v311, 4
    %v313 = vadd.f32 %v311, %v312
    %v314 = vrot.slane %v313, 2
    %v315 = vadd.f32 %v313, %v314
    %v316 = vrot.slane %v315, 1
    %v317 = vadd.f32 %v315, %v316
    %v318 = vmax.f32 %v300, %v317
    %v319 = vmul.f32 %v92, %v124
    %v320 = vmul.f32 %v93, %v125
    %v321 = vmul.f32 %v94, %v126
    %v322 = vmul.f32 %v95, %v127
    %v323 = vsel %vm164, %v319, 0.0
    %v324 = vsel %vm164, %v320, 0.0
    %v325 = vadd.f32 %v323, %v324
    %v326 = vsel %vm164, %v321, 0.0
    %v327 = vadd.f32 %v325, %v326
    %v328 = vsel %vm164, %v322, 0.0
    %v329 = vadd.f32 %v327, %v328
    %v330 = vrot.slane %v329, 4
    %v331 = vadd.f32 %v329, %v330
    %v332 = vrot.slane %v331, 2
    %v333 = vadd.f32 %v331, %v332
    %v334 = vrot.slane %v333, 1
    %v335 = vadd.f32 %v333, %v334
    %v336 = vmax.f32 %v318, %v335
    %v337 = vsub.f32 %v177, %v177
    %v338 = vsub.f32 %v194, %v212
    %v339 = vsub.f32 %v211, %v212
    %v340 = vsub.f32 %v229, %v265
    %v341 = vsub.f32 %v246, %v265
    %v342 = vsub.f32 %v264, %v265
    %v343 = vsub.f32 %v282, %v336
    %v344 = vsub.f32 %v299, %v336
    %v345 = vsub.f32 %v317, %v336
    %v346 = vsub.f32 %v335, %v336
    %vm347 = vcmask 1040384
    %v348 = vsel %vm347, %v337, %v338
    %vm349 = vcmask 1041408
    %v350 = vsel %vm349, %v348, %v339
    %vm351 = vcmask 1042432
    %v352 = vsel %vm351, %v350, %v340
    %vm353 = vcmask 1043456
    %v354 = vsel %vm353, %v352, %v341
    %vm355 = vcmask 1044480
    %v356 = vsel %vm355, %v354, %v342
    %vm357 = vcmask 1045504
    %v358 = vsel %vm357, %v356, %v343
    %vm359 = vcmask 1046528
    %v360 = vsel %vm359, %v358, %v344
    %v361 = vsel %vm347, %v345, %v346
    %v362 = vmul.f32 %v360, 1.442695
    %v363 = vpow.pop %v362
    %v364 = vmul.f32 %v361, 1.442695
    %v365 = vpow.pop %v364
    %v367 = vrot.slane %v363, 1
    %v369 = vadd.f32 %v363, %v367
    %v370 = vrot.slane %v363, 2
    %v372 = vadd.f32 %v369, %v370
    %v374 = vrot.slane %v365, 2
    %v376 = vadd.f32 %v369, %v374
    %v377 = vrot.slane %v365, 3
    %v379 = vadd.f32 %v376, %v377
    %v381 = vrot.slane %v372, 1
    %v384 = vrot.slane %v379, 3
    %v386 = vsel %vm347, %v363, %v369
    %v387 = vsel %vm349, %v386, %v381
    %v388 = vsel %vm351, %v387, %v384
    %v389 = vrcp.pop %v388
    %v390 = vlaneseq
    %v391 = vshrl.u32 %v390, 7
    %v392 = vsub.s32 0, %v391
    %v393 = vrot.slane %v363, %v392
    %v394 = vmul.f32 %v393, %v144
    %v395 = vmul.f32 %v393, %v145
    %v396 = vmul.f32 %v393, %v146
    %v397 = vmul.f32 %v393, %v147
    %v398 = vlaneseq
    %v399 = vshrl.u32 %v398, 7
    %v400 = vsub.s32 0, %v399
    %v401 = vrot.slane %v389, %v400
    %v402 = vmul.f32 %v394, %v401
    %v403 = vmul.f32 %v395, %v401
    %v404 = vmul.f32 %v396, %v401
    %v405 = vmul.f32 %v397, %v401
    %v406 = vlaneseq
    %v407 = vshrl.u32 %v406, 7
    %v408 = vsub.s32 1, %v407
    %v409 = vrot.slane %v363, %v408
    %v410 = vmul.f32 %v409, %v144
    %v411 = vmul.f32 %v409, %v145
    %v412 = vmul.f32 %v409, %v146
    %v413 = vmul.f32 %v409, %v147
    %v414 = vlaneseq
    %v415 = vshrl.u32 %v414, 7
    %v416 = vsub.s32 2, %v415
    %v417 = vrot.slane %v363, %v416
    %v418 = vmul.f32 %v417, %v148
    %v419 = vmul.f32 %v417, %v149
    %v420 = vmul.f32 %v417, %v150
    %v421 = vmul.f32 %v417, %v151
    %v422 = vadd.f32 %v410, %v418
    %v423 = vadd.f32 %v411, %v419
    %v424 = vadd.f32 %v412, %v420
    %v425 = vadd.f32 %v413, %v421
    %v426 = vlaneseq
    %v427 = vshrl.u32 %v426, 7
    %v428 = vsub.s32 1, %v427
    %v429 = vrot.slane %v389, %v428
    %v430 = vmul.f32 %v422, %v429
    %v431 = vmul.f32 %v423, %v429
    %v432 = vmul.f32 %v424, %v429
    %v433 = vmul.f32 %v425, %v429
    %v434 = vlaneseq
    %v435 = vshrl.u32 %v434, 7
    %v436 = vsub.s32 3, %v435
    %v437 = vrot.slane %v363, %v436
    %v438 = vmul.f32 %v437, %v144
    %v439 = vmul.f32 %v437, %v145
    %v440 = vmul.f32 %v437, %v146
    %v441 = vmul.f32 %v437, %v147
    %v442 = vlaneseq
    %v443 = vshrl.u32 %v442, 7
    %v444 = vsub.s32 4, %v443
    %v445 = vrot.slane %v363, %v444
    %v446 = vmul.f32 %v445, %v148
    %v447 = vmul.f32 %v445, %v149
    %v448 = vmul.f32 %v445, %v150
    %v449 = vmul.f32 %v445, %v151
    %v450 = vadd.f32 %v438, %v446
    %v451 = vadd.f32 %v439, %v447
    %v452 = vadd.f32 %v440, %v448
    %v453 = vadd.f32 %v441, %v449
    %v454 = vlaneseq
    %v455 = vshrl.u32 %v454, 7
    %v456 = vsub.s32 5, %v455
    %v457 = vrot.slane %v363, %v456
    %v458 = vmul.f32 %v457, %v152
    %v459 = vmul.f32 %v457, %v153
    %v460 = vmul.f32 %v457, %v154
    %v461 = vmul.f32 %v457, %v155
    %v462 = vadd.f32 %v450, %v458
    %v463 = vadd.f32 %v451, %v459
    %v464 = vadd.f32 %v452, %v460
    %v465 = vadd.f32 %v453, %v461
    %v466 = vlaneseq
    %v467 = vshrl.u32 %v466, 7
    %v468 = vsub.s32 2, %v467
    %v469 = vrot.slane %v389, %v468
    %v470 = vmul.f32 %v462, %v469
    %v471 = vmul.f32 %v463, %v469
    %v472 = vmul.f32 %v464, %v469
    %v473 = vmul.f32 %v465, %v469
    %v474 = vlaneseq
    %v475 = vshrl.u32 %v474, 7
    %v476 = vsub.s32 6, %v475
    %v477 = vrot.slane %v363, %v476
    %v478 = vmul.f32 %v477, %v144
    %v479 = vmul.f32 %v477, %v145
    %v480 = vmul.f32 %v477, %v146
    %v481 = vmul.f32 %v477, %v147
    %v482 = vlaneseq
    %v483 = vshrl.u32 %v482, 7
    %v484 = vsub.s32 7, %v483
    %v485 = vrot.slane %v363, %v484
    %v486 = vmul.f32 %v485, %v148
    %v487 = vmul.f32 %v485, %v149
    %v488 = vmul.f32 %v485, %v150
    %v489 = vmul.f32 %v485, %v151
    %v490 = vadd.f32 %v478, %v486
    %v491 = vadd.f32 %v479, %v487
    %v492 = vadd.f32 %v480, %v488
    %v493 = vadd.f32 %v481, %v489
    %v494 = vlaneseq
    %v495 = vshrl.u32 %v494, 7
    %v496 = vsub.s32 0, %v495
    %v497 = vrot.slane %v365, %v496
    %v498 = vmul.f32 %v497, %v152
    %v499 = vmul.f32 %v497, %v153
    %v500 = vmul.f32 %v497, %v154
    %v501 = vmul.f32 %v497, %v155
    %v502 = vadd.f32 %v490, %v498
    %v503 = vadd.f32 %v491, %v499
    %v504 = vadd.f32 %v492, %v500
    %v505 = vadd.f32 %v493, %v501
    %v506 = vlaneseq
    %v507 = vshrl.u32 %v506, 7
    %v508 = vsub.s32 1, %v507
    %v509 = vrot.slane %v365, %v508
    %v510 = vmul.f32 %v509, %v156
    %v511 = vmul.f32 %v509, %v157
    %v512 = vmul.f32 %v509, %v158
    %v513 = vmul.f32 %v509, %v159
    %v514 = vadd.f32 %v502, %v510
    %v515 = vadd.f32 %v503, %v511
    %v516 = vadd.f32 %v504, %v512
    %v517 = vadd.f32 %v505, %v513
    %v518 = vlaneseq
    %v519 = vshrl.u32 %v518, 7
    %v520 = vsub.s32 3, %v519
    %v521 = vrot.slane %v389, %v520
    %v522 = vmul.f32 %v514, %v521
    %v523 = vmul.f32 %v515, %v521
    %v524 = vmul.f32 %v516, %v521
    %v525 = vmul.f32 %v517, %v521
    %526 = vxpose.xlu0.b32.start [1/16] %v402, 128
    %527 = vxpose.xlu0.b32.cont [2/16] %v403, 128
    %528 = vxpose.xlu0.b32.cont [3/16] %v404, 128
    %529 = vxpose.xlu0.b32.cont [4/16] %v405, 128
    %530 = vxpose.xlu0.b32.cont [5/16] %v430, 128
    %531 = vxpose.xlu0.b32.cont [6/16] %v431, 128
    %532 = vxpose.xlu0.b32.cont [7/16] %v432, 128
    %533 = vxpose.xlu0.b32.cont [8/16] %v433, 128
    %534 = vxpose.xlu0.b32.cont [9/16] %v470, 128
    %535 = vxpose.xlu0.b32.cont [10/16] %v471, 128
    %536 = vxpose.xlu0.b32.cont [11/16] %v472, 128
    %537 = vxpose.xlu0.b32.cont [12/16] %v473, 128
    %538 = vxpose.xlu0.b32.cont [13/16] %v522, 128
    %539 = vxpose.xlu0.b32.cont [14/16] %v523, 128
    %540 = vxpose.xlu0.b32.cont [15/16] %v524, 128
    %541 = vxpose.xlu0.b32.end [16/16] %v525, 128
    %v542 = vpop.trf.xlu0
    %v543 = vpop.trf.xlu0
    %v544 = vpop.trf.xlu0
    %v545 = vpop.trf.xlu0
    %v546 = vpop.trf.xlu0
    %v547 = vpop.trf.xlu0
    %v548 = vpop.trf.xlu0
    %v549 = vpop.trf.xlu0
    %v550 = vpop.trf.xlu0
    %v551 = vpop.trf.xlu0
    %v552 = vpop.trf.xlu0
    %v553 = vpop.trf.xlu0
    %v554 = vpop.trf.xlu0
    %v555 = vpop.trf.xlu0
    %v556 = vpop.trf.xlu0
    %v557 = vpop.trf.xlu0
    %558 = vst [vmem:[#allocation8] sm:$0xff] %v542
    %559 = vst [vmem:[#allocation8 + $0x8] sm:$0xff] %v543
    // Predicated region
    $region26: #{tpu_custom_call.1} parent=1 // pred_check
      _
    $region27: #{tpu_custom_call.1} parent=1 // pred_check_branch
      %561 = sbr.rel (0) target = $region29
    $region28: #{tpu_custom_call.1} parent=1 // pred_region
      %s563 = ssub.s32 256, 256
      %564 = vsyncadd [#allocation4], %s563
      %s565 = sshll.u32 [#allocation8], 4
      %s566 = int_to_ptr.vmem [resolvable:$true] %s565
      %571 = dma.vmem_to_hbm [thread:$0]  %s566, 256, %s3, [#allocation4], 128, 128, 8
    $region29: #{tpu_custom_call.1} parent=1 // pred_fallthru
      _
    // Predicated region
    $region30: #{tpu_custom_call.1} parent=1 // pred_check
      _
    $region31: #{tpu_custom_call.1} parent=1 // pred_check_branch
      %573 = sbr.rel (0) target = $region33
    $region32: #{tpu_custom_call.1} parent=1 // pred_region
      %574 = dma.done [#allocation4], 256
    $region33: #{tpu_custom_call.1} parent=1 // pred_fallthru
      _
    %575 = vsyncpa [#allocation3], 1
    %576 = vsyncpa [#allocation6], 1
    %577 = vsyncpa [#allocation4], 1

</llo_original>
